<compile_context>
chip_gen: v5e
topology: v5e:2x2
jax: 0.10.0
libtpu: 0.0.40
codegen_flags: <defaults>
</compile_context>

<pallas_src>
import functools

import jax
import jax.numpy as jnp
import numpy as np
from jax import lax
from jax.experimental import pallas as pl
from jax.experimental.pallas import tpu as pltpu


def _cross_set_norm_kernel(x_ref, alive_ref, wo_ref, bo_ref, wr_ref, br_ref,
                           o_ref, *, n_obj):
    """One (TB, N, D) batch tile: masked mean/var per segment over the set
    axis (single-pass sums), normalize, per-feature affine, write both
    segments.

    NB: n_obj should be a multiple of 8 (f32 sublane) so the segment slices
    and partial output stores stay tile-aligned; true for the module's
    ro_max + 1 = 128 and for the demo's 16."""

    def _norm_segment(xs, alive, w, b, n_seg):
        # xs: (TB, n_seg, D) f32; alive: (TB, n_seg, 1) f32 (1 = alive);
        # w / b: (1, D) f32.
        xm = xs * alive                                               # masked x
        count = jnp.maximum(jnp.sum(alive, axis=1, keepdims=True), 1.0)
        has_many = count > 1.0                                        # torch "batch_mask"
        inv_count = 1.0 / count                                       # (TB,1,1), exact
        s1 = jnp.sum(xm, axis=1, keepdims=True)                       # (TB,1,D)
        s2 = jnp.sum(xm * xm, axis=1, keepdims=True)                  # (TB,1,D)
        mean = jnp.where(has_many, s1 * inv_count, s1)
        # torch sums (xm - mean)^2 over ALL n_seg positions (dead slots
        # contribute mean^2):  sum((xm-mean)^2) = s2 - 2*mean*s1 + n_seg*mean^2.
        var = (s2 - 2.0 * mean * s1 + float(n_seg) * mean * mean) * inv_count
        # std == 1 when the segment has <= 1 valid element (matches torch).
        inv_std = jnp.where(has_many, lax.rsqrt(var + 1e-6), 1.0)     # EUP
        # F.linear(normed, diag_embed(w), b) == normed * w + b; fold the affine
        # and the mean subtraction into a single fused multiply-add.
        scale = inv_std * w                                           # (TB,1,D)
        shift = b - mean * scale                                      # (TB,1,D)
        return xm * scale + shift

    # Convert the int8 alive mask to f32 once for the whole tile.
    alive = alive_ref[...].astype(jnp.float32)                        # (TB, N, 1)
    n_road = o_ref.shape[1] - n_obj

    # Object segment.
    o_ref[:, :n_obj, :] = _norm_segment(
        x_ref[:, :n_obj, :].astype(jnp.float32), alive[:, :n_obj],
        wo_ref[...], bo_ref[...], n_obj).astype(o_ref.dtype)

    # Road segment.
    o_ref[:, n_obj:, :] = _norm_segment(
        x_ref[:, n_obj:, :].astype(jnp.float32), alive[:, n_obj:],
        wr_ref[...], br_ref[...], n_road).astype(o_ref.dtype)


def _vmem_limit_bytes():
    """~Half of physical per-core VMEM: 32 MiB on v7x, 64 MiB on v5e/v6e."""
    cap = None
    try:
        cap = getattr(pltpu.get_tpu_info(), "vmem_capacity_bytes", None)
    except Exception:
        cap = None
    if not cap:
        cap = 64 * 1024 * 1024            # assume the smallest generation (v7x)
    return int(min(64 * 1024 * 1024, cap // 2))


def _auto_batch_block(N, D, itemsize, vmem_limit):
    """Largest batch tile whose true live set (double-buffered in/out blocks,
    in-kernel f32 temporaries, padded int8 mask block) stays inside the VMEM
    limit with headroom for compiler scratch/spills."""
    d_pad = pl.cdiv(D, 128) * 128                    # lane padding
    n_pad = pl.cdiv(N, 8) * 8                        # f32 sublane padding
    n_pad_i8 = pl.cdiv(N, 32) * 32                   # int8 sublane padding
    x_block = n_pad * d_pad * itemsize
    per_row = (2 * 2 * x_block                       # x in + out, double-buffered
               + 4 * n_pad * d_pad * 4               # live f32 temps (xm, x*x, alive, out)
               + 2 * n_pad_i8 * 128)                 # int8 alive, double-buffered
    tb = int(vmem_limit * 0.6) // max(per_row, 1)
    return int(max(1, min(128, tb)))


def _pick_batch_tile(B, tb_cap):
    """Largest divisor of B that is <= tb_cap: every grid step maps onto real
    batch rows, so no wrapper-side jnp.pad of x and no out[:B] copy."""
    tb_cap = max(1, min(int(tb_cap), B))
    for t in range(tb_cap, 0, -1):
        if B % t == 0:
            return t
    return 1


def cross_set_norm(x, mask, n_obj, weights_obj, biases_obj,
                   weights_road, biases_road, *, batch_block=None):
    """Full CrossSetNorm.forward: per-batch masked normalization of the object
    and road segments over the set axis + per-feature affine, in one kernel."""
    B, N, D = x.shape
    # 1 = alive, 0 = dead; int8 keeps the mask ~4x cheaper than f32 in HBM.
    alive = (~mask).astype(jnp.int8)[..., None]                       # (B, N, 1)

    vmem_limit = _vmem_limit_bytes()
    if batch_block is None:
        tb_cap = _auto_batch_block(N, D, x.dtype.itemsize, vmem_limit)
        # >= 4 grid steps total => >= 2 per TensorCore on v7x megacore and
        # DMA/compute pipelining on every generation.
        tb_cap = min(tb_cap, max(1, pl.cdiv(B, 4)))
    else:
        tb_cap = batch_block
    tb = _pick_batch_tile(B, tb_cap)
    num_blocks = B // tb

    w_obj = weights_obj.reshape(1, D).astype(jnp.float32)
    b_obj = biases_obj.reshape(1, D).astype(jnp.float32)
    w_road = weights_road.reshape(1, D).astype(jnp.float32)
    b_road = biases_road.reshape(1, D).astype(jnp.float32)

    kernel = functools.partial(_cross_set_norm_kernel, n_obj=n_obj)
    itemsize = x.dtype.itemsize
    cost = pl.CostEstimate(
        flops=8 * B * N * D,
        transcendentals=2 * B * D,
        bytes_accessed=2 * B * N * D * itemsize + B * N,
    )

    return pl.pallas_call(
        kernel,
        out_shape=jax.ShapeDtypeStruct((B, N, D), x.dtype),
        grid_spec=pltpu.PrefetchScalarGridSpec(
            num_scalar_prefetch=0,
            grid=(num_blocks,),
            in_specs=[
                pl.BlockSpec((tb, N, D), lambda i: (i, 0, 0)),   # x
                pl.BlockSpec((tb, N, 1), lambda i: (i, 0, 0)),   # alive (int8)
                pl.BlockSpec((1, D), lambda i: (0, 0)),          # w_obj
                pl.BlockSpec((1, D), lambda i: (0, 0)),          # b_obj
                pl.BlockSpec((1, D), lambda i: (0, 0)),          # w_road
                pl.BlockSpec((1, D), lambda i: (0, 0)),          # b_road
            ],
            out_specs=pl.BlockSpec((tb, N, D), lambda i: (i, 0, 0)),
        ),
        compiler_params=pltpu.CompilerParams(
            dimension_semantics=("parallel",),       # batch tiles independent
            vmem_limit_bytes=vmem_limit,             # generation-aware
        ),
        cost_estimate=cost,
    )(x, alive, w_obj, b_obj, w_road, b_road)


def _reference(x, mask, n_obj, wo, bo, wr, br):
    """Pure-JAX reference mirroring the PyTorch forward exactly."""
    def seg(xs, ms, w, b):
        alive = (~ms).astype(xs.dtype)[..., None]
        cnt = jnp.maximum(alive.sum(axis=1, keepdims=True), 1.0)
        bm = cnt > 1.0
        xm = xs * alive
        s = xm.sum(axis=1, keepdims=True)
        mean = jnp.where(bm, s / cnt, s)
        var = ((xm - mean) ** 2).sum(axis=1, keepdims=True) / cnt
        std = jnp.where(bm, jnp.sqrt(var + 1e-6), jnp.ones_like(s))
        return (xm - mean) / std * w + b
    return jnp.concatenate(
        [seg(x[:, :n_obj], mask[:, :n_obj], wo, bo),
         seg(x[:, n_obj:], mask[:, n_obj:], wr, br)], axis=1)


if __name__ == "__main__":
    B, N_OBJ, N_ROAD, D = 10, 16, 24, 32
    N = N_OBJ + N_ROAD

    key = jax.random.PRNGKey(0)
    kx, km = jax.random.split(key)
    x = jax.random.normal(kx, (B, N, D), dtype=jnp.float32)
    mask = jax.random.bernoulli(km, 0.3, (B, N))     # True = masked / dead
    # Exercise the degenerate branches: all-dead and single-alive segments.
    mask = mask.at[0, :N_OBJ].set(True)
    mask = mask.at[1, :N_OBJ].set(True)
    mask = mask.at[1, 0].set(False)

    # Module __init__: constant init (weights = 1, biases = 0), feature_dim = D
    weights_obj = jnp.ones((D,), jnp.float32)
    biases_obj = jnp.zeros((D,), jnp.float32)
    weights_road = jnp.ones((D,), jnp.float32)
    biases_road = jnp.zeros((D,), jnp.float32)

    ref = _reference(x, mask, N_OBJ, weights_obj, biases_obj,
                     weights_road, biases_road)

    # Auto-tiled path: tb snapped to a divisor of B (tb=2, grid=5), no padding.
    out = jax.block_until_ready(
        cross_set_norm(x, mask, N_OBJ, weights_obj, biases_obj,
                       weights_road, biases_road))
    np.testing.assert_allclose(np.asarray(out), np.asarray(ref),
                               rtol=1e-5, atol=1e-5)

    # Explicit batch_block override (tb=5, grid=2) — still divisor-snapped.
    out_tiled = jax.block_until_ready(
        cross_set_norm(x, mask, N_OBJ, weights_obj, biases_obj,
                       weights_road, biases_road, batch_block=5))
    np.testing.assert_allclose(np.asarray(out_tiled), np.asarray(ref),
                               rtol=1e-5, atol=1e-5)

    print("KERNEL_OK")
</pallas_src>

<mosaic_0001>
module attributes {stable_mosaic.version = 11 : i64} {
  func.func @_cross_set_norm_kernel(%arg0: i32, %arg1: memref<2x40x32xf32, #tpu.memory_space<vmem>>, %arg2: memref<2x40x1xi8, #tpu.memory_space<vmem>>, %arg3: memref<1x32xf32, #tpu.memory_space<vmem>>, %arg4: memref<1x32xf32, #tpu.memory_space<vmem>>, %arg5: memref<1x32xf32, #tpu.memory_space<vmem>>, %arg6: memref<1x32xf32, #tpu.memory_space<vmem>>, %arg7: memref<2x40x32xf32, #tpu.memory_space<vmem>>) attributes {dimension_semantics = [#tpu.dimension_semantics<parallel>], iteration_bounds = array<i64: 5>, scalar_prefetch = 0 : i64, scratch_operands = 0 : i64, tpu.core_type = #tpu.core_type<tc>, window_params = [{transform_indices = @transform_0, window_bounds = array<i64: 2, 40, 32>}, {transform_indices = @transform_1, window_bounds = array<i64: 2, 40, 1>}, {pipeline_mode = #tpu.pipeline_mode<synchronous>, transform_indices = @transform_2, window_bounds = array<i64: 1, 32>}, {pipeline_mode = #tpu.pipeline_mode<synchronous>, transform_indices = @transform_3, window_bounds = array<i64: 1, 32>}, {pipeline_mode = #tpu.pipeline_mode<synchronous>, transform_indices = @transform_4, window_bounds = array<i64: 1, 32>}, {pipeline_mode = #tpu.pipeline_mode<synchronous>, transform_indices = @transform_5, window_bounds = array<i64: 1, 32>}, {transform_indices = @transform_6, window_bounds = array<i64: 2, 40, 32>}]} {
    %c0 = arith.constant 0 : index
    %c0_0 = arith.constant 0 : index
    %c0_1 = arith.constant 0 : index
    %0 = vector.load %arg2[%c0, %c0_0, %c0_1] : memref<2x40x1xi8, #tpu.memory_space<vmem>>, vector<2x40x1xi8>
    %1 = arith.sitofp %0 : vector<2x40x1xi8> to vector<2x40x1xf32>
    %c0_2 = arith.constant 0 : index
    %c0_3 = arith.constant 0 : index
    %c0_4 = arith.constant 0 : index
    %2 = vector.load %arg1[%c0_2, %c0_3, %c0_4] : memref<2x40x32xf32, #tpu.memory_space<vmem>>, vector<2x16x32xf32>
    %3 = vector.extract_strided_slice %1 {offsets = [0, 0, 0], sizes = [2, 16, 1], strides = [1, 1, 1]} : vector<2x40x1xf32> to vector<2x16x1xf32>
    %c0_5 = arith.constant 0 : index
    %c0_6 = arith.constant 0 : index
    %4 = vector.load %arg3[%c0_5, %c0_6] : memref<1x32xf32, #tpu.memory_space<vmem>>, vector<1x32xf32>
    %c0_7 = arith.constant 0 : index
    %c0_8 = arith.constant 0 : index
    %5 = vector.load %arg4[%c0_7, %c0_8] : memref<1x32xf32, #tpu.memory_space<vmem>>, vector<1x32xf32>
    %6 = vector.broadcast %3 : vector<2x16x1xf32> to vector<2x16x32xf32>
    %7 = arith.mulf %2, %6 : vector<2x16x32xf32>
    %cst = arith.constant dense<0.000000e+00> : vector<2x1xf32>
    %8 = vector.multi_reduction <add>, %3, %cst [1] : vector<2x16x1xf32> to vector<2x1xf32>
    %9 = vector.shape_cast %8 : vector<2x1xf32> to vector<2x1x1xf32>
    %cst_9 = arith.constant 1.000000e+00 : f32
    %10 = vector.broadcast %cst_9 : f32 to vector<2x1x1xf32>
    %11 = arith.maximumf %9, %10 : vector<2x1x1xf32>
    %cst_10 = arith.constant 1.000000e+00 : f32
    %12 = vector.broadcast %cst_10 : f32 to vector<2x1x1xf32>
    %13 = arith.cmpf ogt, %11, %12 : vector<2x1x1xf32>
    %cst_11 = arith.constant 1.000000e+00 : f32
    %14 = vector.broadcast %cst_11 : f32 to vector<2x1x1xf32>
    %15 = arith.divf %14, %11 : vector<2x1x1xf32>
    %cst_12 = arith.constant dense<0.000000e+00> : vector<2x32xf32>
    %16 = vector.multi_reduction <add>, %7, %cst_12 [1] : vector<2x16x32xf32> to vector<2x32xf32>
    %17 = vector.shape_cast %16 : vector<2x32xf32> to vector<2x1x32xf32>
    %18 = arith.mulf %7, %7 : vector<2x16x32xf32>
    %cst_13 = arith.constant dense<0.000000e+00> : vector<2x32xf32>
    %19 = vector.multi_reduction <add>, %18, %cst_13 [1] : vector<2x16x32xf32> to vector<2x32xf32>
    %20 = vector.shape_cast %19 : vector<2x32xf32> to vector<2x1x32xf32>
    %21 = vector.broadcast %15 : vector<2x1x1xf32> to vector<2x1x32xf32>
    %22 = arith.mulf %17, %21 : vector<2x1x32xf32>
    %23 = vector.shape_cast %13 : vector<2x1x1xi1> to vector<2x1x1xi1>
    %24 = vector.broadcast %23 : vector<2x1x1xi1> to vector<2x1x32xi1>
    %25 = arith.select %24, %22, %17 : vector<2x1x32xi1>, vector<2x1x32xf32>
    %cst_14 = arith.constant 2.000000e+00 : f32
    %26 = vector.broadcast %cst_14 : f32 to vector<2x1x32xf32>
    %27 = arith.mulf %26, %25 : vector<2x1x32xf32>
    %28 = arith.mulf %27, %17 : vector<2x1x32xf32>
    %29 = arith.subf %20, %28 : vector<2x1x32xf32>
    %cst_15 = arith.constant 1.600000e+01 : f32
    %30 = vector.broadcast %cst_15 : f32 to vector<2x1x32xf32>
    %31 = arith.mulf %30, %25 : vector<2x1x32xf32>
    %32 = arith.mulf %31, %25 : vector<2x1x32xf32>
    %33 = arith.addf %29, %32 : vector<2x1x32xf32>
    %34 = vector.broadcast %15 : vector<2x1x1xf32> to vector<2x1x32xf32>
    %35 = arith.mulf %33, %34 : vector<2x1x32xf32>
    %cst_16 = arith.constant 9.99999997E-7 : f32
    %36 = vector.broadcast %cst_16 : f32 to vector<2x1x32xf32>
    %37 = arith.addf %35, %36 : vector<2x1x32xf32>
    %38 = math.rsqrt %37 : vector<2x1x32xf32>
    %cst_17 = arith.constant 1.000000e+00 : f32
    %39 = vector.shape_cast %13 : vector<2x1x1xi1> to vector<2x1x1xi1>
    %40 = vector.broadcast %39 : vector<2x1x1xi1> to vector<2x1x32xi1>
    %41 = vector.broadcast %cst_17 : f32 to vector<2x1x32xf32>
    %42 = arith.select %40, %38, %41 : vector<2x1x32xi1>, vector<2x1x32xf32>
    %43 = vector.shape_cast %4 : vector<1x32xf32> to vector<1x1x32xf32>
    %44 = vector.broadcast %43 : vector<1x1x32xf32> to vector<2x1x32xf32>
    %45 = arith.mulf %42, %44 : vector<2x1x32xf32>
    %46 = arith.mulf %25, %45 : vector<2x1x32xf32>
    %47 = vector.shape_cast %5 : vector<1x32xf32> to vector<1x1x32xf32>
    %48 = vector.broadcast %47 : vector<1x1x32xf32> to vector<2x1x32xf32>
    %49 = arith.subf %48, %46 : vector<2x1x32xf32>
    %50 = vector.broadcast %45 : vector<2x1x32xf32> to vector<2x16x32xf32>
    %51 = arith.mulf %7, %50 : vector<2x16x32xf32>
    %52 = vector.broadcast %49 : vector<2x1x32xf32> to vector<2x16x32xf32>
    %53 = arith.addf %51, %52 : vector<2x16x32xf32>
    %c0_18 = arith.constant 0 : index
    %c0_19 = arith.constant 0 : index
    %c0_20 = arith.constant 0 : index
    %54 = vector.load %arg7[%c0_18, %c0_19, %c0_20] : memref<2x40x32xf32, #tpu.memory_space<vmem>>, vector<2x16x32xf32>
    tpu.vector_store %arg7[%c0_18, %c0_19, %c0_20], %53 {strides = array<i32>} : memref<2x40x32xf32, #tpu.memory_space<vmem>>, vector<2x16x32xf32>,
    %c0_21 = arith.constant 0 : index
    %c16 = arith.constant 16 : index
    %c0_22 = arith.constant 0 : index
    %55 = vector.load %arg1[%c0_21, %c16, %c0_22] : memref<2x40x32xf32, #tpu.memory_space<vmem>>, vector<2x24x32xf32>
    %56 = vector.extract_strided_slice %1 {offsets = [0, 16, 0], sizes = [2, 24, 1], strides = [1, 1, 1]} : vector<2x40x1xf32> to vector<2x24x1xf32>
    %c0_23 = arith.constant 0 : index
    %c0_24 = arith.constant 0 : index
    %57 = vector.load %arg5[%c0_23, %c0_24] : memref<1x32xf32, #tpu.memory_space<vmem>>, vector<1x32xf32>
    %c0_25 = arith.constant 0 : index
    %c0_26 = arith.constant 0 : index
    %58 = vector.load %arg6[%c0_25, %c0_26] : memref<1x32xf32, #tpu.memory_space<vmem>>, vector<1x32xf32>
    %59 = vector.broadcast %56 : vector<2x24x1xf32> to vector<2x24x32xf32>
    %60 = arith.mulf %55, %59 : vector<2x24x32xf32>
    %cst_27 = arith.constant dense<0.000000e+00> : vector<2x1xf32>
    %61 = vector.multi_reduction <add>, %56, %cst_27 [1] : vector<2x24x1xf32> to vector<2x1xf32>
    %62 = vector.shape_cast %61 : vector<2x1xf32> to vector<2x1x1xf32>
    %cst_28 = arith.constant 1.000000e+00 : f32
    %63 = vector.broadcast %cst_28 : f32 to vector<2x1x1xf32>
    %64 = arith.maximumf %62, %63 : vector<2x1x1xf32>
    %cst_29 = arith.constant 1.000000e+00 : f32
    %65 = vector.broadcast %cst_29 : f32 to vector<2x1x1xf32>
    %66 = arith.cmpf ogt, %64, %65 : vector<2x1x1xf32>
    %cst_30 = arith.constant 1.000000e+00 : f32
    %67 = vector.broadcast %cst_30 : f32 to vector<2x1x1xf32>
    %68 = arith.divf %67, %64 : vector<2x1x1xf32>
    %cst_31 = arith.constant dense<0.000000e+00> : vector<2x32xf32>
    %69 = vector.multi_reduction <add>, %60, %cst_31 [1] : vector<2x24x32xf32> to vector<2x32xf32>
    %70 = vector.shape_cast %69 : vector<2x32xf32> to vector<2x1x32xf32>
    %71 = arith.mulf %60, %60 : vector<2x24x32xf32>
    %cst_32 = arith.constant dense<0.000000e+00> : vector<2x32xf32>
    %72 = vector.multi_reduction <add>, %71, %cst_32 [1] : vector<2x24x32xf32> to vector<2x32xf32>
    %73 = vector.shape_cast %72 : vector<2x32xf32> to vector<2x1x32xf32>
    %74 = vector.broadcast %68 : vector<2x1x1xf32> to vector<2x1x32xf32>
    %75 = arith.mulf %70, %74 : vector<2x1x32xf32>
    %76 = vector.shape_cast %66 : vector<2x1x1xi1> to vector<2x1x1xi1>
    %77 = vector.broadcast %76 : vector<2x1x1xi1> to vector<2x1x32xi1>
    %78 = arith.select %77, %75, %70 : vector<2x1x32xi1>, vector<2x1x32xf32>
    %cst_33 = arith.constant 2.000000e+00 : f32
    %79 = vector.broadcast %cst_33 : f32 to vector<2x1x32xf32>
    %80 = arith.mulf %79, %78 : vector<2x1x32xf32>
    %81 = arith.mulf %80, %70 : vector<2x1x32xf32>
    %82 = arith.subf %73, %81 : vector<2x1x32xf32>
    %cst_34 = arith.constant 2.400000e+01 : f32
    %83 = vector.broadcast %cst_34 : f32 to vector<2x1x32xf32>
    %84 = arith.mulf %83, %78 : vector<2x1x32xf32>
    %85 = arith.mulf %84, %78 : vector<2x1x32xf32>
    %86 = arith.addf %82, %85 : vector<2x1x32xf32>
    %87 = vector.broadcast %68 : vector<2x1x1xf32> to vector<2x1x32xf32>
    %88 = arith.mulf %86, %87 : vector<2x1x32xf32>
    %cst_35 = arith.constant 9.99999997E-7 : f32
    %89 = vector.broadcast %cst_35 : f32 to vector<2x1x32xf32>
    %90 = arith.addf %88, %89 : vector<2x1x32xf32>
    %91 = math.rsqrt %90 : vector<2x1x32xf32>
    %cst_36 = arith.constant 1.000000e+00 : f32
    %92 = vector.shape_cast %66 : vector<2x1x1xi1> to vector<2x1x1xi1>
    %93 = vector.broadcast %92 : vector<2x1x1xi1> to vector<2x1x32xi1>
    %94 = vector.broadcast %cst_36 : f32 to vector<2x1x32xf32>
    %95 = arith.select %93, %91, %94 : vector<2x1x32xi1>, vector<2x1x32xf32>
    %96 = vector.shape_cast %57 : vector<1x32xf32> to vector<1x1x32xf32>
    %97 = vector.broadcast %96 : vector<1x1x32xf32> to vector<2x1x32xf32>
    %98 = arith.mulf %95, %97 : vector<2x1x32xf32>
    %99 = arith.mulf %78, %98 : vector<2x1x32xf32>
    %100 = vector.shape_cast %58 : vector<1x32xf32> to vector<1x1x32xf32>
    %101 = vector.broadcast %100 : vector<1x1x32xf32> to vector<2x1x32xf32>
    %102 = arith.subf %101, %99 : vector<2x1x32xf32>
    %103 = vector.broadcast %98 : vector<2x1x32xf32> to vector<2x24x32xf32>
    %104 = arith.mulf %60, %103 : vector<2x24x32xf32>
    %105 = vector.broadcast %102 : vector<2x1x32xf32> to vector<2x24x32xf32>
    %106 = arith.addf %104, %105 : vector<2x24x32xf32>
    %c0_37 = arith.constant 0 : index
    %c16_38 = arith.constant 16 : index
    %c0_39 = arith.constant 0 : index
    %107 = vector.load %arg7[%c0_37, %c16_38, %c0_39] : memref<2x40x32xf32, #tpu.memory_space<vmem>>, vector<2x24x32xf32>
    tpu.vector_store %arg7[%c0_37, %c16_38, %c0_39], %106 {strides = array<i32>} : memref<2x40x32xf32, #tpu.memory_space<vmem>>, vector<2x24x32xf32>,
    return
  }
  func.func @transform_0(%arg0: i32) -> (i32, i32, i32) {
    %c0_i32 = arith.constant 0 : i32
    %c0_i32_0 = arith.constant 0 : i32
    %c0_i32_1 = arith.constant 0 : i32
    return %arg0, %c0_i32, %c0_i32_0 : i32, i32, i32
  }
  func.func @transform_1(%arg0: i32) -> (i32, i32, i32) {
    %c0_i32 = arith.constant 0 : i32
    %c0_i32_0 = arith.constant 0 : i32
    %c0_i32_1 = arith.constant 0 : i32
    return %arg0, %c0_i32, %c0_i32_0 : i32, i32, i32
  }
  func.func @transform_2(%arg0: i32) -> (i32, i32) {
    %c0_i32 = arith.constant 0 : i32
    %c0_i32_0 = arith.constant 0 : i32
    %c0_i32_1 = arith.constant 0 : i32
    return %c0_i32, %c0_i32_0 : i32, i32
  }
  func.func @transform_3(%arg0: i32) -> (i32, i32) {
    %c0_i32 = arith.constant 0 : i32
    %c0_i32_0 = arith.constant 0 : i32
    %c0_i32_1 = arith.constant 0 : i32
    return %c0_i32, %c0_i32_0 : i32, i32
  }
  func.func @transform_4(%arg0: i32) -> (i32, i32) {
    %c0_i32 = arith.constant 0 : i32
    %c0_i32_0 = arith.constant 0 : i32
    %c0_i32_1 = arith.constant 0 : i32
    return %c0_i32, %c0_i32_0 : i32, i32
  }
  func.func @transform_5(%arg0: i32) -> (i32, i32) {
    %c0_i32 = arith.constant 0 : i32
    %c0_i32_0 = arith.constant 0 : i32
    %c0_i32_1 = arith.constant 0 : i32
    return %c0_i32, %c0_i32_0 : i32, i32
  }
  func.func @transform_6(%arg0: i32) -> (i32, i32, i32) {
    %c0_i32 = arith.constant 0 : i32
    %c0_i32_0 = arith.constant 0 : i32
    %c0_i32_1 = arith.constant 0 : i32
    return %arg0, %c0_i32, %c0_i32_0 : i32, i32, i32
  }
}

</mosaic_0001>

<llo_original>
// kernel: tpu_custom_call.1
$region0: #{tpu_custom_call.1}
  #allocation0 [shape = 'u32[]', space=smem, size = 0x4, offset = 0x4, fixed_abs, tag = 'smem constant byte address 0x4 - core index']
  #allocation1 [shape = 'u32[72,128]{1,0:T(1,128)}', space=vmem, size = 0x9000, scoped, tag = 'internal scratch']
  %s0 = inlined_call_operand.vmem [shape: f32[10,40,32], index: 0, kind: input, shape index: {}]
  %s1 = inlined_call_operand.vmem [shape: s8[10,40,1], index: 1, kind: input, shape index: {}]
  %s2 = inlined_call_operand.vmem [shape: f32[1,32], index: 2, kind: input, shape index: {}]
  %s3 = inlined_call_operand.vmem [shape: f32[1,32], index: 3, kind: input, shape index: {}]
  %s4 = inlined_call_operand.vmem [shape: f32[1,32], index: 4, kind: input, shape index: {}]
  %s5 = inlined_call_operand.vmem [shape: f32[1,32], index: 5, kind: input, shape index: {}]
  %s6 = inlined_call_operand.vmem [shape: f32[10,40,32], index: 6, kind: output, shape index: {}]
  %s7 = sld [smem:[#allocation0]]
  $region57: #{tpu_custom_call.1} parent=0
    _
  %s9 = ssub.s32 1, %s7
  %s10 = scalar_select 0, %s9, %s7
  loop: start=0, step=1, limit=7
  $region2: #{tpu_custom_call.1} parent=0 // loop_pre_header
    _
  $region3: #{tpu_custom_call.1} parent=0 // loop_header
    %s12 = sphi 0, %s16
    %p13 = scmp.ge.s32.totalorder %s12, 7
    %s22 = sphi 0, %s24
    %s25 = sphi 0, %s22
    %s26 = sphi 0, %s25
    %s42 = sphi 0, %s26
    %s48 = sphi 0, %s50
    %s51 = sphi 0, %s48
    %s52 = sphi 0, %s51
    %s68 = sphi 0, %s52
    %s72 = sphi 0, %s72
    %s74 = sphi 0, %s72
    %s75 = sphi 0, %s74
    %s89 = sphi 0, %s75
    %s93 = sphi 0, %s93
    %s95 = sphi 0, %s93
    %s96 = sphi 0, %s95
    %s110 = sphi 0, %s96
    %s114 = sphi 0, %s114
    %s116 = sphi 0, %s114
    %s117 = sphi 0, %s116
    %s131 = sphi 0, %s117
    %s135 = sphi 0, %s135
    %s137 = sphi 0, %s135
    %s138 = sphi 0, %s137
    %s152 = sphi 0, %s138
    %s158 = sphi 0, %s160
    %s161 = sphi 0, %s158
    %s162 = sphi 0, %s161
    %s178 = sphi 0, %s162
  $region4: #{tpu_custom_call.1} parent=0 // loop_header_branch
    %15 = sbr.rel (%p13) target = $region8
  $region5: #{tpu_custom_call.1} parent=0 // loop_body
    %s17 = ssub.s32 %s12, 1
    %s18 = ssub.s32 %s12, 2
    %s19 = sadd.s32 %s12, 1
    %s20 = ssub.s32 %s12, %s19
    %p21 = scmp.eq.s32.totalorder %s20, 0
    %s23 = sadd.s32 %s22, 1
    %s24 = scalar_select %p21, %s22, %s23
    %p27 = pneg %p21
    %p28 = scmp.eq.s32.totalorder %s12, 4
    %p29 = por %p27, %p28
    %p30 = scmp.ne.s32.totalorder %s22, %s25
    %p31 = scmp.eq.s32.totalorder %s12, 0
    %p32 = por %p30, %p31
    %p33 = scmp.ne.s32.totalorder %s22, %s25
    %p34 = scmp.eq.s32.totalorder %s17, 4
    %p35 = por %p33, %p34
    %p36 = scmp.ne.s32.totalorder %s25, %s26
    %p37 = scmp.eq.s32.totalorder %s17, 0
    %p38 = por %p36, %p37
    %p39 = scmp.ne.s32.totalorder %s25, %s26
    %p40 = scmp.eq.s32.totalorder %s18, 4
    %p41 = por %p39, %p40
    %p43 = scmp.ne.s32.totalorder %s26, %s42
    %p44 = scmp.eq.s32.totalorder %s18, 0
    %p45 = por %p43, %p44
    %s46 = ssub.s32 %s12, %s19
    %p47 = scmp.eq.s32.totalorder %s46, 0
    %s49 = sadd.s32 %s48, 1
    %s50 = scalar_select %p47, %s48, %s49
    %p53 = pneg %p47
    %p54 = scmp.eq.s32.totalorder %s12, 4
    %p55 = por %p53, %p54
    %p56 = scmp.ne.s32.totalorder %s48, %s51
    %p57 = scmp.eq.s32.totalorder %s12, 0
    %p58 = por %p56, %p57
    %p59 = scmp.ne.s32.totalorder %s48, %s51
    %p60 = scmp.eq.s32.totalorder %s17, 4
    %p61 = por %p59, %p60
    %p62 = scmp.ne.s32.totalorder %s51, %s52
    %p63 = scmp.eq.s32.totalorder %s17, 0
    %p64 = por %p62, %p63
    %p65 = scmp.ne.s32.totalorder %s51, %s52
    %p66 = scmp.eq.s32.totalorder %s18, 4
    %p67 = por %p65, %p66
    %p69 = scmp.ne.s32.totalorder %s52, %s68
    %p70 = scmp.eq.s32.totalorder %s18, 0
    %p71 = por %p69, %p70
    %s73 = sadd.s32 %s72, 1
    %p76 = scmp.eq.s32.totalorder %s12, 4
    %p77 = scmp.ne.s32.totalorder %s72, %s74
    %p78 = scmp.eq.s32.totalorder %s12, 0
    %p79 = por %p77, %p78
    %p80 = scmp.ne.s32.totalorder %s72, %s74
    %p81 = scmp.eq.s32.totalorder %s17, 4
    %p82 = por %p80, %p81
    %p83 = scmp.ne.s32.totalorder %s74, %s75
    %p84 = scmp.eq.s32.totalorder %s17, 0
    %p85 = por %p83, %p84
    %p86 = scmp.ne.s32.totalorder %s74, %s75
    %p87 = scmp.eq.s32.totalorder %s18, 4
    %p88 = por %p86, %p87
    %p90 = scmp.ne.s32.totalorder %s75, %s89
    %p91 = scmp.eq.s32.totalorder %s18, 0
    %p92 = por %p90, %p91
    %s94 = sadd.s32 %s93, 1
    %p97 = scmp.eq.s32.totalorder %s12, 4
    %p98 = scmp.ne.s32.totalorder %s93, %s95
    %p99 = scmp.eq.s32.totalorder %s12, 0
    %p100 = por %p98, %p99
    %p101 = scmp.ne.s32.totalorder %s93, %s95
    %p102 = scmp.eq.s32.totalorder %s17, 4
    %p103 = por %p101, %p102
    %p104 = scmp.ne.s32.totalorder %s95, %s96
    %p105 = scmp.eq.s32.totalorder %s17, 0
    %p106 = por %p104, %p105
    %p107 = scmp.ne.s32.totalorder %s95, %s96
    %p108 = scmp.eq.s32.totalorder %s18, 4
    %p109 = por %p107, %p108
    %p111 = scmp.ne.s32.totalorder %s96, %s110
    %p112 = scmp.eq.s32.totalorder %s18, 0
    %p113 = por %p111, %p112
    %s115 = sadd.s32 %s114, 1
    %p118 = scmp.eq.s32.totalorder %s12, 4
    %p119 = scmp.ne.s32.totalorder %s114, %s116
    %p120 = scmp.eq.s32.totalorder %s12, 0
    %p121 = por %p119, %p120
    %p122 = scmp.ne.s32.totalorder %s114, %s116
    %p123 = scmp.eq.s32.totalorder %s17, 4
    %p124 = por %p122, %p123
    %p125 = scmp.ne.s32.totalorder %s116, %s117
    %p126 = scmp.eq.s32.totalorder %s17, 0
    %p127 = por %p125, %p126
    %p128 = scmp.ne.s32.totalorder %s116, %s117
    %p129 = scmp.eq.s32.totalorder %s18, 4
    %p130 = por %p128, %p129
    %p132 = scmp.ne.s32.totalorder %s117, %s131
    %p133 = scmp.eq.s32.totalorder %s18, 0
    %p134 = por %p132, %p133
    %s136 = sadd.s32 %s135, 1
    %p139 = scmp.eq.s32.totalorder %s12, 4
    %p140 = scmp.ne.s32.totalorder %s135, %s137
    %p141 = scmp.eq.s32.totalorder %s12, 0
    %p142 = por %p140, %p141
    %p143 = scmp.ne.s32.totalorder %s135, %s137
    %p144 = scmp.eq.s32.totalorder %s17, 4
    %p145 = por %p143, %p144
    %p146 = scmp.ne.s32.totalorder %s137, %s138
    %p147 = scmp.eq.s32.totalorder %s17, 0
    %p148 = por %p146, %p147
    %p149 = scmp.ne.s32.totalorder %s137, %s138
    %p150 = scmp.eq.s32.totalorder %s18, 4
    %p151 = por %p149, %p150
    %p153 = scmp.ne.s32.totalorder %s138, %s152
    %p154 = scmp.eq.s32.totalorder %s18, 0
    %p155 = por %p153, %p154
    %s156 = ssub.s32 %s12, %s19
    %p157 = scmp.eq.s32.totalorder %s156, 0
    %s159 = sadd.s32 %s158, 1
    %s160 = scalar_select %p157, %s158, %s159
    %p163 = pneg %p157
    %p164 = scmp.eq.s32.totalorder %s12, 4
    %p165 = por %p163, %p164
    %p166 = scmp.ne.s32.totalorder %s158, %s161
    %p167 = scmp.eq.s32.totalorder %s12, 0
    %p168 = por %p166, %p167
    %p169 = scmp.ne.s32.totalorder %s158, %s161
    %p170 = scmp.eq.s32.totalorder %s17, 4
    %p171 = por %p169, %p170
    %p172 = scmp.ne.s32.totalorder %s161, %s162
    %p173 = scmp.eq.s32.totalorder %s17, 0
    %p174 = por %p172, %p173
    %p175 = scmp.ne.s32.totalorder %s161, %s162
    %p176 = scmp.eq.s32.totalorder %s18, 4
    %p177 = por %p175, %p176
    %p179 = scmp.ne.s32.totalorder %s162, %s178
    %p180 = scmp.eq.s32.totalorder %s18, 0
    %p181 = por %p179, %p180
    %p182 = scmp.le.s32.totalorder 1, %s12
    %p183 = scmp.lt.s32.totalorder %s12, 6
    %p184 = pnand %p182, %p183
    %p185 = pneg %p184
    // Predicated region
    $region9: #{tpu_custom_call.1} parent=5 // pred_check
      _
    $region10: #{tpu_custom_call.1} parent=5 // pred_check_branch
      %187 = sbr.rel (%p184) target = $region12
    $region11: #{tpu_custom_call.1} parent=5 // pred_region
      %s188 = ssub.s32 %s12, 1
      // Predicated region
      $region13: #{tpu_custom_call.1} parent=11 // pred_check
        %p189 = pneg %p85
      $region14: #{tpu_custom_call.1} parent=11 // pred_check_branch
        %191 = sbr.rel (%p189) target = $region16
      $region15: #{tpu_custom_call.1} parent=11 // pred_region
        _
      $region16: #{tpu_custom_call.1} parent=11 // pred_fallthru
        _
      // Predicated region
      $region17: #{tpu_custom_call.1} parent=11 // pred_check
        %p192 = pneg %p106
      $region18: #{tpu_custom_call.1} parent=11 // pred_check_branch
        %194 = sbr.rel (%p192) target = $region20
      $region19: #{tpu_custom_call.1} parent=11 // pred_region
        _
      $region20: #{tpu_custom_call.1} parent=11 // pred_fallthru
        _
      // Predicated region
      $region21: #{tpu_custom_call.1} parent=11 // pred_check
        %p195 = pneg %p127
      $region22: #{tpu_custom_call.1} parent=11 // pred_check_branch
        %197 = sbr.rel (%p195) target = $region24
      $region23: #{tpu_custom_call.1} parent=11 // pred_region
        _
      $region24: #{tpu_custom_call.1} parent=11 // pred_fallthru
        _
      // Predicated region
      $region25: #{tpu_custom_call.1} parent=11 // pred_check
        %p198 = pneg %p148
      $region26: #{tpu_custom_call.1} parent=11 // pred_check_branch
        %200 = sbr.rel (%p198) target = $region28
      $region27: #{tpu_custom_call.1} parent=11 // pred_region
        _
      $region28: #{tpu_custom_call.1} parent=11 // pred_fallthru
        _
    $region12: #{tpu_custom_call.1} parent=5 // pred_fallthru
      _
    %p201 = scmp.lt.s32.totalorder %s12, 5
    // Predicated region
    $region29: #{tpu_custom_call.1} parent=5 // pred_check
      %p202 = pneg %p201
    $region30: #{tpu_custom_call.1} parent=5 // pred_check_branch
      %204 = sbr.rel (%p202) target = $region32
    $region31: #{tpu_custom_call.1} parent=5 // pred_region
      // Predicated region
      $region33: #{tpu_custom_call.1} parent=31 // pred_check
        %p205 = pneg %p32
      $region34: #{tpu_custom_call.1} parent=31 // pred_check_branch
        %207 = sbr.rel (%p205) target = $region36
      $region35: #{tpu_custom_call.1} parent=31 // pred_region
        %s208 = smul.u32 2, %s12
        %p209 = scmp.lt.s32.totalorder %s208, 9
        %s210 = scalar_select %p209, %s208, 9
        %s211 = smul.addr %s210, 5
        %s212 = smul.addr %s211, 8
        %s213 = scalar_lea.vmem %s0, %s212
        %s214 = smul.u32 2, %s12
      $region36: #{tpu_custom_call.1} parent=31 // pred_fallthru
        _
      // Predicated region
      $region37: #{tpu_custom_call.1} parent=31 // pred_check
        %p215 = pneg %p58
      $region38: #{tpu_custom_call.1} parent=31 // pred_check_branch
        %217 = sbr.rel (%p215) target = $region40
      $region39: #{tpu_custom_call.1} parent=31 // pred_region
        %s218 = smul.u32 2, %s12
        %p219 = scmp.lt.s32.totalorder %s218, 9
        %s220 = scalar_select %p219, %s218, 9
        %s221 = smul.addr %s220, 5
        %s222 = smul.addr %s221, 2
        %s223 = scalar_lea.vmem %s1, %s222
        %s224 = smul.u32 2, %s12
      $region40: #{tpu_custom_call.1} parent=31 // pred_fallthru
        _
    $region32: #{tpu_custom_call.1} parent=5 // pred_fallthru
      _
    %p225 = scmp.le.s32.totalorder 1, %s12
    %p226 = scmp.lt.s32.totalorder %s12, 6
    %p227 = pnand %p225, %p226
    %p228 = pneg %p227
    // Predicated region
    $region41: #{tpu_custom_call.1} parent=5 // pred_check
      _
    $region42: #{tpu_custom_call.1} parent=5 // pred_check_branch
      %230 = sbr.rel (%p227) target = $region44
    $region43: #{tpu_custom_call.1} parent=5 // pred_region
      %s231 = ssub.s32 %s12, 1
      %s232 = smul.u32 2, %s17
      %p233 = scmp.lt.s32.totalorder %s232, 9
      %s234 = scalar_select %p233, %s232, 9
      %s235 = smul.addr %s234, 5
      %s236 = smul.addr %s235, 8
      %s237 = scalar_lea.vmem %s0, %s236
      %p238 = pneg %p38
      %p239 = pneg %p35
      %s240 = smul.u32 2, %s17
      %p241 = scmp.lt.s32.totalorder %s240, 9
      %s242 = scalar_select %p241, %s240, 9
      %s243 = smul.addr %s242, 5
      %s244 = smul.addr %s243, 2
      %s245 = scalar_lea.vmem %s1, %s244
      %p246 = pneg %p64
      %p247 = pneg %p61
      %p248 = pneg %p85
      %p249 = pneg %p82
      %p250 = pneg %p106
      %p251 = pneg %p103
      %p252 = pneg %p127
      %p253 = pneg %p124
      %p254 = pneg %p148
      %p255 = pneg %p145
      %p256 = pneg %p174
      %p257 = pneg %p171
      %s258 = smul.u32 2, %s17
      %p259 = scmp.lt.s32.totalorder %s258, 9
      %s260 = scalar_select %p259, %s258, 9
      %s261 = smul.addr %s260, 5
      %s262 = smul.addr %s261, 8
      %s263 = scalar_lea.vmem %s6, %s262
      %s264 = smul.u32 2, %s17
      %p265 = scmp.lt.s32.totalorder %s264, 9
      %s266 = scalar_select %p265, %s264, 9
      %s267 = smul.addr %s266, 5
      %s268 = smul.addr %s267, 8
      %s269 = scalar_lea.vmem %s0, %s268
      %s270 = smul.u32 2, %s17
      %s271 = smul.u32 2, %s17
      %p272 = scmp.lt.s32.totalorder %s271, 9
      %s273 = scalar_select %p272, %s271, 9
      %s274 = smul.addr %s273, 5
      %s275 = smul.addr %s274, 2
      %s276 = scalar_lea.vmem %s1, %s275
      %s277 = smul.u32 2, %s17
      %s278 = smul.u32 2, %s17
      %p279 = scmp.lt.s32.totalorder %s278, 9
      %s280 = scalar_select %p279, %s278, 9
      %s281 = smul.addr %s280, 5
      %s282 = smul.addr %s281, 8
      %s283 = scalar_lea.vmem %s6, %s282
      %s284 = smul.u32 2, %s17
      %v285 = vld [vmem:[%s276] sm:$0x3]
      %v286 = vld [vmem:[%s276 + $0x2] sm:$0x3]
      %v287 = vld [vmem:[%s276 + $0x4] sm:$0x3]
      %v288 = vld [vmem:[%s276 + $0x6] sm:$0x3]
      %v289 = vld [vmem:[%s276 + $0x8] sm:$0x3]
      %v290 = vld [vmem:[%s276 + $0xa] sm:$0x3]
      %v291 = vld [vmem:[%s276 + $0xc] sm:$0x3]
      %v292 = vld [vmem:[%s276 + $0xe] sm:$0x3]
      %v293 = vld [vmem:[%s276 + $0x10] sm:$0x3]
      %v294 = vld [vmem:[%s276 + $0x12] sm:$0x3]
      %v295 = vunpack.c.0.s8 %v285
      %v296 = vunpack.c.0.s8 %v286
      %v297 = vunpack.c.0.s8 %v287
      %v298 = vunpack.c.0.s8 %v288
      %v299 = vunpack.c.0.s8 %v289
      %v300 = vunpack.c.0.s8 %v290
      %v301 = vunpack.c.0.s8 %v291
      %v302 = vunpack.c.0.s8 %v292
      %v303 = vunpack.c.0.s8 %v293
      %v304 = vunpack.c.0.s8 %v294
      %v305 = vcvt.s32.f32 %v295
      %v306 = vcvt.s32.f32 %v296
      %v307 = vcvt.s32.f32 %v297
      %v308 = vcvt.s32.f32 %v298
      %v309 = vcvt.s32.f32 %v299
      %v310 = vcvt.s32.f32 %v300
      %v311 = vcvt.s32.f32 %v301
      %v312 = vcvt.s32.f32 %v302
      %v313 = vcvt.s32.f32 %v303
      %v314 = vcvt.s32.f32 %v304
      %v315 = vld [vmem:[%s269] sm:$0xff]
      %v316 = vld [vmem:[%s269 + $0x8] sm:$0xff]
      %v317 = vld [vmem:[%s269 + $0x28] sm:$0xff]
      %v318 = vld [vmem:[%s269 + $0x30] sm:$0xff]
      %v319 = vld [vmem:[%s2] sm:$0x1]
      %v320 = vld [vmem:[%s3] sm:$0x1]
      %322 = vset.pattern.permute.xlu0 0
      %323 = vperm.xlu0 %322, %v305
      %v324 = vpop.permute.xlu0 %323
      %327 = vset.pattern.permute.xlu0 0
      %328 = vperm.xlu0 %327, %v306
      %v329 = vpop.permute.xlu0 %328
      %332 = vset.pattern.permute.xlu0 0
      %333 = vperm.xlu0 %332, %v310
      %v334 = vpop.permute.xlu0 %333
      %337 = vset.pattern.permute.xlu0 0
      %338 = vperm.xlu0 %337, %v311
      %v339 = vpop.permute.xlu0 %338
      %v341 = vmul.f32 %v315, %v324
      %v342 = vmul.f32 %v316, %v329
      %v343 = vmul.f32 %v317, %v334
      %v344 = vmul.f32 %v318, %v339
      %vm345 = vcmask 7168
      %v346 = vsel %vm345, %v305, 0.0
      %v347 = vsel %vm345, %v306, 0.0
      %v348 = vadd.f32 %v346, %v347
      %v349 = vrot.slane %v348, 4
      %v350 = vadd.f32 %v348, %v349
      %v351 = vrot.slane %v350, 2
      %v352 = vadd.f32 %v350, %v351
      %v353 = vrot.slane %v352, 1
      %v354 = vadd.f32 %v352, %v353
      %v355 = vsel %vm345, %v310, 0.0
      %v356 = vsel %vm345, %v311, 0.0
      %v357 = vadd.f32 %v355, %v356
      %v358 = vrot.slane %v357, 4
      %v359 = vadd.f32 %v357, %v358
      %v360 = vrot.slane %v359, 2
      %v361 = vadd.f32 %v359, %v360
      %v362 = vrot.slane %v361, 1
      %v363 = vadd.f32 %v361, %v362
      %v364 = vmax.f32 %v354, 1.0
      %v365 = vmax.f32 %v363, 1.0
      %vm366 = vcmp.gt.f32.partialorder %v364, 1.0
      %vm367 = vcmp.gt.f32.partialorder %v365, 1.0
      %v368 = vrcp.pop %v364
      %v369 = vmul.f32 %v364, %v368
      %v370 = vsub.f32 1.0, %v369
      %v371 = vmul.f32 %v368, %v370
      %v372 = vadd.f32 %v368, %v371
      %vm373 = vweird.f32 %v364
      %vm374 = vweird.f32 %v368
      %vm375 = vmor %vm373, %vm374
      %v376 = vsel %vm375, %v368, %v372
      %v377 = vand.u32 2147483647, %v364
      %vm378 = vcmp.eq.f32.partialorder %v377, 8.507059e+37
      %v379 = vand.u32 %v364, 2147483648
      %v380 = vor.u32 1.1754944e-38, %v379
      %v381 = vsel %vm378, %v380, %v376
      %v382 = vmul.f32 1.0, %v381
      %v383 = vrcp.pop %v365
      %v384 = vmul.f32 %v365, %v383
      %v385 = vsub.f32 1.0, %v384
      %v386 = vmul.f32 %v383, %v385
      %v387 = vadd.f32 %v383, %v386
      %vm388 = vweird.f32 %v365
      %vm389 = vweird.f32 %v383
      %vm390 = vmor %vm388, %vm389
      %v391 = vsel %vm390, %v383, %v387
      %v392 = vand.u32 2147483647, %v365
      %vm393 = vcmp.eq.f32.partialorder %v392, 8.507059e+37
      %v394 = vand.u32 %v365, 2147483648
      %v395 = vor.u32 1.1754944e-38, %v394
      %v396 = vsel %vm393, %v395, %v391
      %v397 = vmul.f32 1.0, %v396
      %vm398 = vcmask 261120
      %v399 = vsel %vm398, %v341, 0.0
      %v400 = vsel %vm398, %v342, 0.0
      %v401 = vadd.f32 %v399, %v400
      %v402 = vrot.slane %v401, 4
      %v403 = vadd.f32 %v401, %v402
      %v404 = vrot.slane %v403, 2
      %v405 = vadd.f32 %v403, %v404
      %v406 = vrot.slane %v405, 1
      %v407 = vadd.f32 %v405, %v406
      %v408 = vsel %vm398, %v343, 0.0
      %v409 = vsel %vm398, %v344, 0.0
      %v410 = vadd.f32 %v408, %v409
      %v411 = vrot.slane %v410, 4
      %v412 = vadd.f32 %v410, %v411
      %v413 = vrot.slane %v412, 2
      %v414 = vadd.f32 %v412, %v413
      %v415 = vrot.slane %v414, 1
      %v416 = vadd.f32 %v414, %v415
      %v417 = vmul.f32 %v341, %v341
      %v418 = vmul.f32 %v342, %v342
      %v419 = vmul.f32 %v343, %v343
      %v420 = vmul.f32 %v344, %v344
      %v421 = vsel %vm398, %v417, 0.0
      %v422 = vsel %vm398, %v418, 0.0
      %v423 = vadd.f32 %v421, %v422
      %v424 = vrot.slane %v423, 4
      %v425 = vadd.f32 %v423, %v424
      %v426 = vrot.slane %v425, 2
      %v427 = vadd.f32 %v425, %v426
      %v428 = vrot.slane %v427, 1
      %v429 = vadd.f32 %v427, %v428
      %v430 = vsel %vm398, %v419, 0.0
      %v431 = vsel %vm398, %v420, 0.0
      %v432 = vadd.f32 %v430, %v431
      %v433 = vrot.slane %v432, 4
      %v434 = vadd.f32 %v432, %v433
      %v435 = vrot.slane %v434, 2
      %v436 = vadd.f32 %v434, %v435
      %v437 = vrot.slane %v436, 1
      %v438 = vadd.f32 %v436, %v437
      %440 = vset.pattern.permute.xlu0 0
      %441 = vperm.xlu0 %440, %v382
      %v442 = vpop.permute.xlu0 %441
      %445 = vset.pattern.permute.xlu0 0
      %446 = vperm.xlu0 %445, %v397
      %v447 = vpop.permute.xlu0 %446
      %v449 = vmul.f32 %v407, %v442
      %v450 = vmul.f32 %v416, %v447
      %v451 = vsel %vm366, 1, 0
      %v452 = vsel %vm367, 1, 0
      %453 = vset.pattern.permute.xlu0 0
      %454 = vperm.xlu0 %453, %v451
      %v455 = vpop.permute.xlu0 %454
      %456 = vset.pattern.permute.xlu0 0
      %457 = vperm.xlu0 %456, %v452
      %v458 = vpop.permute.xlu0 %457
      %vm459 = vcmp.eq.s32.totalorder %v455, 1
      %vm460 = vcmp.eq.s32.totalorder %v458, 1
      %v461 = vsel %vm459, %v449, %v407
      %v462 = vsel %vm460, %v450, %v416
      %v463 = vmul.f32 %v461, 2.0
      %v464 = vmul.f32 %v462, 2.0
      %v465 = vmul.f32 %v463, %v407
      %v466 = vmul.f32 %v464, %v416
      %v467 = vsub.f32 %v429, %v465
      %v468 = vsub.f32 %v438, %v466
      %v469 = vmul.f32 %v461, 16.0
      %v470 = vmul.f32 %v462, 16.0
      %v471 = vmul.f32 %v469, %v461
      %v472 = vmul.f32 %v470, %v462
      %v473 = vadd.f32 %v467, %v471
      %v474 = vadd.f32 %v468, %v472
      %v475 = vmul.f32 %v473, %v442
      %v476 = vmul.f32 %v474, %v447
      %v477 = vadd.f32 %v475, 1e-06
      %v478 = vadd.f32 %v476, 1e-06
      %v479 = vrsqrt.pop %v477
      %v480 = vmul.f32 %v479, %v477
      %v481 = vmul.f32 %v480, %v479
      %v482 = vmul.f32 0.5, %v481
      %v483 = vsub.f32 1.5, %v482
      %v484 = vmul.f32 %v479, %v483
      %vm485 = vweird.f32 %v477
      %vm486 = vweird.f32 %v479
      %vm487 = vmor %vm485, %vm486
      %v488 = vsel %vm487, %v479, %v484
      %v489 = vrsqrt.pop %v478
      %v490 = vmul.f32 %v489, %v478
      %v491 = vmul.f32 %v490, %v489
      %v492 = vmul.f32 0.5, %v491
      %v493 = vsub.f32 1.5, %v492
      %v494 = vmul.f32 %v489, %v493
      %vm495 = vweird.f32 %v478
      %vm496 = vweird.f32 %v489
      %vm497 = vmor %vm495, %vm496
      %v498 = vsel %vm497, %v489, %v494
      %v499 = vsel %vm459, %v488, 1.0
      %v500 = vsel %vm460, %v498, 1.0
      %v501 = vmul.f32 %v499, %v319
      %v502 = vmul.f32 %v500, %v319
      %v503 = vmul.f32 %v461, %v501
      %v504 = vmul.f32 %v462, %v502
      %v505 = vsub.f32 %v320, %v503
      %v506 = vsub.f32 %v320, %v504
      %v507 = vperm.slane %v501, 0
      %v508 = vperm.slane %v502, 0
      %v509 = vmul.f32 %v341, %v507
      %v510 = vmul.f32 %v342, %v507
      %v511 = vmul.f32 %v343, %v508
      %v512 = vmul.f32 %v344, %v508
      %v515 = vperm.slane %v505, 0
      %v516 = vperm.slane %v506, 0
      %v519 = vadd.f32 %v509, %v515
      %v520 = vadd.f32 %v510, %v515
      %v521 = vadd.f32 %v511, %v516
      %v522 = vadd.f32 %v512, %v516
      %523 = vst.msk [vmem:[%s283] sm:$0xff] %vm398, %v519
      %524 = vst.msk [vmem:[%s283 + $0x8] sm:$0xff] %vm398, %v520
      %525 = vst.msk [vmem:[%s283 + $0x28] sm:$0xff] %vm398, %v521
      %526 = vst.msk [vmem:[%s283 + $0x30] sm:$0xff] %vm398, %v522
      %v527 = vld [vmem:[%s269 + $0x10] sm:$0xff]
      %v528 = vld [vmem:[%s269 + $0x18] sm:$0xff]
      %v529 = vld [vmem:[%s269 + $0x20] sm:$0xff]
      %v530 = vld [vmem:[%s269 + $0x38] sm:$0xff]
      %v531 = vld [vmem:[%s269 + $0x40] sm:$0xff]
      %v532 = vld [vmem:[%s269 + $0x48] sm:$0xff]
      %v533 = vld [vmem:[%s4] sm:$0x1]
      %v534 = vld [vmem:[%s5] sm:$0x1]
      %536 = vset.pattern.permute.xlu0 0
      %537 = vperm.xlu0 %536, %v307
      %v538 = vpop.permute.xlu0 %537
      %541 = vset.pattern.permute.xlu0 0
      %542 = vperm.xlu0 %541, %v308
      %v543 = vpop.permute.xlu0 %542
      %546 = vset.pattern.permute.xlu0 0
      %547 = vperm.xlu0 %546, %v309
      %v548 = vpop.permute.xlu0 %547
      %551 = vset.pattern.permute.xlu0 0
      %552 = vperm.xlu0 %551, %v312
      %v553 = vpop.permute.xlu0 %552
      %556 = vset.pattern.permute.xlu0 0
      %557 = vperm.xlu0 %556, %v313
      %v558 = vpop.permute.xlu0 %557
      %561 = vset.pattern.permute.xlu0 0
      %562 = vperm.xlu0 %561, %v314
      %v563 = vpop.permute.xlu0 %562
      %v565 = vmul.f32 %v527, %v538
      %v566 = vmul.f32 %v528, %v543
      %v567 = vmul.f32 %v529, %v548
      %v568 = vmul.f32 %v530, %v553
      %v569 = vmul.f32 %v531, %v558
      %v570 = vmul.f32 %v532, %v563
      %v571 = vsel %vm345, %v307, 0.0
      %v572 = vsel %vm345, %v308, 0.0
      %v573 = vadd.f32 %v571, %v572
      %v574 = vsel %vm345, %v309, 0.0
      %v575 = vadd.f32 %v573, %v574
      %v576 = vrot.slane %v575, 4
      %v577 = vadd.f32 %v575, %v576
      %v578 = vrot.slane %v577, 2
      %v579 = vadd.f32 %v577, %v578
      %v580 = vrot.slane %v579, 1
      %v581 = vadd.f32 %v579, %v580
      %v582 = vsel %vm345, %v312, 0.0
      %v583 = vsel %vm345, %v313, 0.0
      %v584 = vadd.f32 %v582, %v583
      %v585 = vsel %vm345, %v314, 0.0
      %v586 = vadd.f32 %v584, %v585
      %v587 = vrot.slane %v586, 4
      %v588 = vadd.f32 %v586, %v587
      %v589 = vrot.slane %v588, 2
      %v590 = vadd.f32 %v588, %v589
      %v591 = vrot.slane %v590, 1
      %v592 = vadd.f32 %v590, %v591
      %v593 = vmax.f32 %v581, 1.0
      %v594 = vmax.f32 %v592, 1.0
      %vm595 = vcmp.gt.f32.partialorder %v593, 1.0
      %vm596 = vcmp.gt.f32.partialorder %v594, 1.0
      %v597 = vrcp.pop %v593
      %v598 = vmul.f32 %v593, %v597
      %v599 = vsub.f32 1.0, %v598
      %v600 = vmul.f32 %v597, %v599
      %v601 = vadd.f32 %v597, %v600
      %vm602 = vweird.f32 %v593
      %vm603 = vweird.f32 %v597
      %vm604 = vmor %vm602, %vm603
      %v605 = vsel %vm604, %v597, %v601
      %v606 = vand.u32 2147483647, %v593
      %vm607 = vcmp.eq.f32.partialorder %v606, 8.507059e+37
      %v608 = vand.u32 %v593, 2147483648
      %v609 = vor.u32 1.1754944e-38, %v608
      %v610 = vsel %vm607, %v609, %v605
      %v611 = vmul.f32 1.0, %v610
      %v612 = vrcp.pop %v594
      %v613 = vmul.f32 %v594, %v612
      %v614 = vsub.f32 1.0, %v613
      %v615 = vmul.f32 %v612, %v614
      %v616 = vadd.f32 %v612, %v615
      %vm617 = vweird.f32 %v594
      %vm618 = vweird.f32 %v612
      %vm619 = vmor %vm617, %vm618
      %v620 = vsel %vm619, %v612, %v616
      %v621 = vand.u32 2147483647, %v594
      %vm622 = vcmp.eq.f32.partialorder %v621, 8.507059e+37
      %v623 = vand.u32 %v594, 2147483648
      %v624 = vor.u32 1.1754944e-38, %v623
      %v625 = vsel %vm622, %v624, %v620
      %v626 = vmul.f32 1.0, %v625
      %v627 = vsel %vm398, %v565, 0.0
      %v628 = vsel %vm398, %v566, 0.0
      %v629 = vadd.f32 %v627, %v628
      %v630 = vsel %vm398, %v567, 0.0
      %v631 = vadd.f32 %v629, %v630
      %v632 = vrot.slane %v631, 4
      %v633 = vadd.f32 %v631, %v632
      %v634 = vrot.slane %v633, 2
      %v635 = vadd.f32 %v633, %v634
      %v636 = vrot.slane %v635, 1
      %v637 = vadd.f32 %v635, %v636
      %v638 = vsel %vm398, %v568, 0.0
      %v639 = vsel %vm398, %v569, 0.0
      %v640 = vadd.f32 %v638, %v639
      %v641 = vsel %vm398, %v570, 0.0
      %v642 = vadd.f32 %v640, %v641
      %v643 = vrot.slane %v642, 4
      %v644 = vadd.f32 %v642, %v643
      %v645 = vrot.slane %v644, 2
      %v646 = vadd.f32 %v644, %v645
      %v647 = vrot.slane %v646, 1
      %v648 = vadd.f32 %v646, %v647
      %v649 = vmul.f32 %v565, %v565
      %v650 = vmul.f32 %v566, %v566
      %v651 = vmul.f32 %v567, %v567
      %v652 = vmul.f32 %v568, %v568
      %v653 = vmul.f32 %v569, %v569
      %v654 = vmul.f32 %v570, %v570
      %v655 = vsel %vm398, %v649, 0.0
      %v656 = vsel %vm398, %v650, 0.0
      %v657 = vadd.f32 %v655, %v656
      %v658 = vsel %vm398, %v651, 0.0
      %v659 = vadd.f32 %v657, %v658
      %v660 = vrot.slane %v659, 4
      %v661 = vadd.f32 %v659, %v660
      %v662 = vrot.slane %v661, 2
      %v663 = vadd.f32 %v661, %v662
      %v664 = vrot.slane %v663, 1
      %v665 = vadd.f32 %v663, %v664
      %v666 = vsel %vm398, %v652, 0.0
      %v667 = vsel %vm398, %v653, 0.0
      %v668 = vadd.f32 %v666, %v667
      %v669 = vsel %vm398, %v654, 0.0
      %v670 = vadd.f32 %v668, %v669
      %v671 = vrot.slane %v670, 4
      %v672 = vadd.f32 %v670, %v671
      %v673 = vrot.slane %v672, 2
      %v674 = vadd.f32 %v672, %v673
      %v675 = vrot.slane %v674, 1
      %v676 = vadd.f32 %v674, %v675
      %678 = vset.pattern.permute.xlu0 0
      %679 = vperm.xlu0 %678, %v611
      %v680 = vpop.permute.xlu0 %679
      %683 = vset.pattern.permute.xlu0 0
      %684 = vperm.xlu0 %683, %v626
      %v685 = vpop.permute.xlu0 %684
      %v687 = vmul.f32 %v637, %v680
      %v688 = vmul.f32 %v648, %v685
      %v689 = vsel %vm595, 1, 0
      %v690 = vsel %vm596, 1, 0
      %691 = vset.pattern.permute.xlu0 0
      %692 = vperm.xlu0 %691, %v689
      %v693 = vpop.permute.xlu0 %692
      %694 = vset.pattern.permute.xlu0 0
      %695 = vperm.xlu0 %694, %v690
      %v696 = vpop.permute.xlu0 %695
      %vm697 = vcmp.eq.s32.totalorder %v693, 1
      %vm698 = vcmp.eq.s32.totalorder %v696, 1
      %v699 = vsel %vm697, %v687, %v637
      %v700 = vsel %vm698, %v688, %v648
      %v701 = vmul.f32 %v699, 2.0
      %v702 = vmul.f32 %v700, 2.0
      %v703 = vmul.f32 %v701, %v637
      %v704 = vmul.f32 %v702, %v648
      %v705 = vsub.f32 %v665, %v703
      %v706 = vsub.f32 %v676, %v704
      %v707 = vmul.f32 %v699, 24.0
      %v708 = vmul.f32 %v700, 24.0
      %v709 = vmul.f32 %v707, %v699
      %v710 = vmul.f32 %v708, %v700
      %v711 = vadd.f32 %v705, %v709
      %v712 = vadd.f32 %v706, %v710
      %v713 = vmul.f32 %v711, %v680
      %v714 = vmul.f32 %v712, %v685
      %v715 = vadd.f32 %v713, 1e-06
      %v716 = vadd.f32 %v714, 1e-06
      %v717 = vrsqrt.pop %v715
      %v718 = vmul.f32 %v717, %v715
      %v719 = vmul.f32 %v718, %v717
      %v720 = vmul.f32 0.5, %v719
      %v721 = vsub.f32 1.5, %v720
      %v722 = vmul.f32 %v717, %v721
      %vm723 = vweird.f32 %v715
      %vm724 = vweird.f32 %v717
      %vm725 = vmor %vm723, %vm724
      %v726 = vsel %vm725, %v717, %v722
      %v727 = vrsqrt.pop %v716
      %v728 = vmul.f32 %v727, %v716
      %v729 = vmul.f32 %v728, %v727
      %v730 = vmul.f32 0.5, %v729
      %v731 = vsub.f32 1.5, %v730
      %v732 = vmul.f32 %v727, %v731
      %vm733 = vweird.f32 %v716
      %vm734 = vweird.f32 %v727
      %vm735 = vmor %vm733, %vm734
      %v736 = vsel %vm735, %v727, %v732
      %v737 = vsel %vm697, %v726, 1.0
      %v738 = vsel %vm698, %v736, 1.0
      %v739 = vmul.f32 %v737, %v533
      %v740 = vmul.f32 %v738, %v533
      %v741 = vmul.f32 %v699, %v739
      %v742 = vmul.f32 %v700, %v740
      %v743 = vsub.f32 %v534, %v741
      %v744 = vsub.f32 %v534, %v742
      %v745 = vperm.slane %v739, 0
      %v746 = vperm.slane %v740, 0
      %v747 = vmul.f32 %v565, %v745
      %v748 = vmul.f32 %v566, %v745
      %v749 = vmul.f32 %v567, %v745
      %v750 = vmul.f32 %v568, %v746
      %v751 = vmul.f32 %v569, %v746
      %v752 = vmul.f32 %v570, %v746
      %v755 = vperm.slane %v743, 0
      %v756 = vperm.slane %v744, 0
      %v759 = vadd.f32 %v747, %v755
      %v760 = vadd.f32 %v748, %v755
      %v761 = vadd.f32 %v749, %v755
      %v762 = vadd.f32 %v750, %v756
      %v763 = vadd.f32 %v751, %v756
      %v764 = vadd.f32 %v752, %v756
      %765 = vst.msk [vmem:[%s283 + $0x10] sm:$0xff] %vm398, %v759
      %766 = vst.msk [vmem:[%s283 + $0x18] sm:$0xff] %vm398, %v760
      %767 = vst.msk [vmem:[%s283 + $0x20] sm:$0xff] %vm398, %v761
      %768 = vst.msk [vmem:[%s283 + $0x38] sm:$0xff] %vm398, %v762
      %769 = vst.msk [vmem:[%s283 + $0x40] sm:$0xff] %vm398, %v763
      %770 = vst.msk [vmem:[%s283 + $0x48] sm:$0xff] %vm398, %v764
      %s771 = smul.u32 2, %s17
      %p772 = scmp.lt.s32.totalorder %s771, 9
      %s773 = scalar_select %p772, %s771, 9
      %s774 = smul.addr %s773, 5
      %s775 = smul.addr %s774, 8
      %s776 = scalar_lea.vmem %s6, %s775
      // Predicated region
      $region45: #{tpu_custom_call.1} parent=43 // pred_check
        %p777 = pneg %p171
      $region46: #{tpu_custom_call.1} parent=43 // pred_check_branch
        %779 = sbr.rel (%p777) target = $region48
      $region47: #{tpu_custom_call.1} parent=43 // pred_region
        %s780 = smul.u32 2, %s17
      $region48: #{tpu_custom_call.1} parent=43 // pred_fallthru
        _
    $region44: #{tpu_custom_call.1} parent=5 // pred_fallthru
      _
    %p781 = scmp.le.s32.totalorder 2, %s12
    // Predicated region
    $region49: #{tpu_custom_call.1} parent=5 // pred_check
      %p782 = pneg %p781
    $region50: #{tpu_custom_call.1} parent=5 // pred_check_branch
      %784 = sbr.rel (%p782) target = $region52
    $region51: #{tpu_custom_call.1} parent=5 // pred_region
      %s785 = ssub.s32 %s12, 2
      // Predicated region
      $region53: #{tpu_custom_call.1} parent=51 // pred_check
        %p786 = pneg %p177
      $region54: #{tpu_custom_call.1} parent=51 // pred_check_branch
        %788 = sbr.rel (%p786) target = $region56
      $region55: #{tpu_custom_call.1} parent=51 // pred_region
        %s789 = smul.u32 2, %s18
        %p790 = scmp.lt.s32.totalorder %s789, 9
        %s791 = scalar_select %p790, %s789, 9
        %s792 = smul.addr %s791, 5
        %s793 = smul.addr %s792, 8
        %s794 = scalar_lea.vmem %s6, %s793
      $region56: #{tpu_custom_call.1} parent=51 // pred_fallthru
        _
    $region52: #{tpu_custom_call.1} parent=5 // pred_fallthru
      _
  $region6: #{tpu_custom_call.1} parent=0 // loop_footer
    %s16 = sadd.s32 1, %s12
  $region7: #{tpu_custom_call.1} parent=0 // loop_footer_branch
    %11 = sbr.rel target = $region3
  $region8: #{tpu_custom_call.1} parent=0 // loop_exit
    _

</llo_original>
